<compile_context>
chip_gen: v7x
topology: tpu7x:2x2x1
jax: 0.10.0
libtpu: 0.0.40
codegen_flags: <defaults>
</compile_context>

<pallas_src>
import functools

import jax
import jax.numpy as jnp
from jax.experimental import pallas as pl
from jax.experimental.pallas import tpu as pltpu

# TODO(synk): the custom backward pass (gradient dropout with probability p)
# is autograd-only in PyTorch and is not reproduced here; only the forward
# (ReLU) semantics are implemented, so jax.grad of this wrapper will not match
# the PyTorch module's custom VJP.

_LANE = 128
_MAX_BLOCK_BYTES = 8 * 1024 * 1024       # per-block cap (footprint 4x this)
_FALLBACK_BLOCK_BYTES = 2 * 1024 * 1024  # if VMEM capacity can't be queried
_MIN_SPLIT_BYTES = 2 * 1024 * 1024       # above this, force >= 2 grid steps


def _relu_kernel(x_ref, o_ref):
    o_ref[...] = jnp.maximum(x_ref[...], jnp.zeros((), dtype=x_ref.dtype))


def _sublane_multiple(dtype) -> int:
    itemsize = jnp.dtype(dtype).itemsize
    return {4: 8, 2: 16, 1: 32}.get(itemsize, 8)


@functools.lru_cache(maxsize=None)
def _vmem_budget():
    """Returns (vmem_limit_bytes_or_None, max_block_bytes) for this chip.

    Leaves ~25% headroom on physical VMEM; block bytes are sized so the
    double-buffered in+out footprint (4 * block_bytes) fits inside the limit.
    """
    try:
        cap = int(pltpu.get_tpu_info().vmem_capacity_bytes)
        limit = (cap * 3) // 4
        block = min(_MAX_BLOCK_BYTES, limit // 4)
        return limit, max(block, 512 * 1024)
    except Exception:
        # Conservative: 2 MiB blocks (8 MiB footprint) fit every generation's
        # scoped-VMEM default, so no explicit limit is needed.
        return None, _FALLBACK_BLOCK_BYTES


def gradient_dropout_relu_forward(x: jax.Array, p: float = 0.5) -> jax.Array:
    """Forward of GradientDropoutReLULayer: elementwise ReLU.

    `p` only affects the (not implemented) custom backward pass; it is
    accepted for API parity and ignored in the forward computation.
    """
    del p  # forward pass does not depend on the dropout probability
    orig_shape = x.shape
    dtype = x.dtype
    n = x.size
    if n == 0:
        return x

    itemsize = jnp.dtype(dtype).itemsize
    sublane = _sublane_multiple(dtype)
    vmem_limit, block_bytes = _vmem_budget()

    flat = jnp.reshape(x, (n,))

    # Largest 128-divisible prefix goes through the Pallas kernel via a
    # copy-free lane-dense (rows, 128) view; the <128-element tail (if any)
    # is handled with a plain jnp.maximum -- no full-tensor pad/slice pass.
    n128 = (n // _LANE) * _LANE
    if n128 == 0:
        return jnp.maximum(x, jnp.zeros((), dtype=dtype))

    rows = n128 // _LANE
    x2d = jnp.reshape(flat[:n128], (rows, _LANE))
    bytes_total = n128 * itemsize

    # Rows per block: ~block_bytes per buffer, dtype-native sublane packing.
    block_rows = block_bytes // (_LANE * itemsize)
    block_rows = max(sublane, (block_rows // sublane) * sublane)

    if bytes_total > _MIN_SPLIT_BYTES:
        # Guarantee >= 2 (preferably an even number of) grid steps so both
        # TensorCores on v7x get work; a single TC can't saturate 3.2 TB/s.
        num_steps = pl.cdiv(rows, block_rows)
        if num_steps < 2:
            num_steps = 2
        if num_steps % 2:
            num_steps += 1
        block_rows = pl.cdiv(rows, num_steps)
        block_rows = max(sublane, pl.cdiv(block_rows, sublane) * sublane)

    if block_rows >= rows:
        # Single block: a block dim equal to the full array dim is always
        # legal, even when `rows` is not a multiple of the sublane packing.
        block_rows = rows

    grid = (pl.cdiv(rows, block_rows),)

    out2d = pl.pallas_call(
        _relu_kernel,
        out_shape=jax.ShapeDtypeStruct((rows, _LANE), dtype),
        grid_spec=pltpu.PrefetchScalarGridSpec(
            num_scalar_prefetch=0,
            grid=grid,
            in_specs=[pl.BlockSpec((block_rows, _LANE), lambda i: (i, 0))],
            out_specs=pl.BlockSpec((block_rows, _LANE), lambda i: (i, 0)),
        ),
        compiler_params=pltpu.CompilerParams(
            dimension_semantics=("parallel",),
            vmem_limit_bytes=vmem_limit,
        ),
        cost_estimate=pl.CostEstimate(
            flops=n128, transcendentals=0, bytes_accessed=2 * n128 * itemsize
        ),
    )(x2d)

    out_flat = jnp.reshape(out2d, (n128,))
    if n128 != n:
        tail = jnp.maximum(flat[n128:], jnp.zeros((), dtype=dtype))
        out_flat = jnp.concatenate([out_flat, tail])
    return jnp.reshape(out_flat, orig_shape)


if __name__ == "__main__":
    key = jax.random.PRNGKey(0)
    p = 0.3  # dropout probability (backward-only; no forward effect)

    # Primary NCHW example plus layout / tiling-path exercising variants.
    test_cases = [
        ((2, 4, 16, 16), jnp.float32),     # lane-dense, single block
        ((3, 5, 7, 11), jnp.float32),      # ragged numel -> prefix + tail path
        ((2, 4, 16, 16), jnp.bfloat16),    # sub-32-bit dtype (16-row sublane)
        ((4, 16, 130, 128), jnp.float32),  # >2 MiB -> >=2 even grid steps
    ]

    keys = jax.random.split(key, len(test_cases))
    for k, (shape, dtype) in zip(keys, test_cases):
        x = jax.random.normal(k, shape, dtype=jnp.float32).astype(dtype)
        y = jax.block_until_ready(gradient_dropout_relu_forward(x, p))
        y_ref = jnp.maximum(x, jnp.zeros((), dtype=dtype))
        assert y.shape == x.shape and y.dtype == x.dtype
        assert jnp.allclose(y, y_ref), f"Pallas ReLU mismatch for {shape} {dtype}"

    print("KERNEL_OK")
</pallas_src>

<mosaic_0001>
module attributes {stable_mosaic.version = 11 : i64} {
  func.func @_relu_kernel(%arg0: i32, %arg1: memref<16x128xf32, #tpu.memory_space<vmem>>, %arg2: memref<16x128xf32, #tpu.memory_space<vmem>>) attributes {dimension_semantics = [#tpu.dimension_semantics<parallel>], iteration_bounds = array<i64: 1>, scalar_prefetch = 0 : i64, scratch_operands = 0 : i64, tpu.core_type = #tpu.core_type<tc>, window_params = [{transform_indices = @transform_0, window_bounds = array<i64: 16, 128>}, {transform_indices = @transform_1, window_bounds = array<i64: 16, 128>}]} {
    %c0 = arith.constant 0 : index
    %c0_0 = arith.constant 0 : index
    %0 = vector.load %arg1[%c0, %c0_0] : memref<16x128xf32, #tpu.memory_space<vmem>>, vector<16x128xf32>
    %cst = arith.constant 0.000000e+00 : f32
    %1 = vector.broadcast %cst : f32 to vector<16x128xf32>
    %2 = arith.maximumf %0, %1 : vector<16x128xf32>
    %c0_1 = arith.constant 0 : index
    %c0_2 = arith.constant 0 : index
    %3 = vector.load %arg2[%c0_1, %c0_2] : memref<16x128xf32, #tpu.memory_space<vmem>>, vector<16x128xf32>
    tpu.vector_store %arg2[%c0_1, %c0_2], %2 {strides = array<i32>} : memref<16x128xf32, #tpu.memory_space<vmem>>, vector<16x128xf32>,
    return
  }
  func.func @transform_0(%arg0: i32) -> (i32, i32) {
    %c0_i32 = arith.constant 0 : i32
    %c0_i32_0 = arith.constant 0 : i32
    return %arg0, %c0_i32 : i32, i32
  }
  func.func @transform_1(%arg0: i32) -> (i32, i32) {
    %c0_i32 = arith.constant 0 : i32
    %c0_i32_0 = arith.constant 0 : i32
    return %arg0, %c0_i32 : i32, i32
  }
}

</mosaic_0001>

<llo_original>
// kernel: tpu_custom_call.1
$region0: #{tpu_custom_call.1}
  #allocation0 [shape = 'u32[]', space=smem, size = 0x4, offset = 0x4, fixed_abs, tag = 'smem constant byte address 0x4 - core index']
  #allocation1 [shape = 'u32[144,128]{1,0:T(1,128)}', space=vmem, size = 0x12000, scoped, tag = 'internal scratch']
  %s0 = inlined_call_operand.hbm [shape: f32[16,128], index: 0, kind: input, shape index: {}]
  %s1 = inlined_call_operand.hbm [shape: f32[16,128], index: 1, kind: output, shape index: {}]
  %s2 = sld [smem:[#allocation0]]
  $region18: #{tpu_custom_call.1} parent=0
    _
  %s4 = ssub.s32 1, %s2
  %s5 = scalar_select 0, %s4, %s2
  $region1: #{tpu_custom_call.1} parent=0
    #allocation2 [shape = 'u8[8192]{0}', space=vmem, size = 0x2000, scoped, tag = 'input window, operand 0, single buffered']
    #allocation3 [shape = 's32[1]{0}', space=sflag, size = 0x4, scoped, tag = 'scoped memory for tpu_custom_call.1']
    #allocation4 [shape = 's32[1]{0}', space=sflag, size = 0x4, scoped, tag = 'scoped memory for tpu_custom_call.1']
    #allocation5 [shape = 'u8[8192]{0}', space=vmem, size = 0x2000, scoped, tag = 'output window, operand 0, single buffered']
    %6 = vsyncpa [#allocation3], 0
    %7 = vsyncpa [#allocation4], 0
    // Predicated region
    $region2: #{tpu_custom_call.1} parent=1 // pred_check
      _
    $region3: #{tpu_custom_call.1} parent=1 // pred_check_branch
      %9 = sbr.rel (0) target = $region5
    $region4: #{tpu_custom_call.1} parent=1 // pred_region
      %s11 = ssub.s32 256, 256
      %12 = vsyncadd [#allocation3], %s11
      %s13 = sshll.u32 [#allocation2], 4
      %s14 = int_to_ptr.vmem [resolvable:$true] %s13
      %19 = dma.hbm_to_vmem [thread:$0]  %s0, 256, %s14, [#allocation3], 128, 128, 8
    $region5: #{tpu_custom_call.1} parent=1 // pred_fallthru
      _
    // Predicated region
    $region6: #{tpu_custom_call.1} parent=1 // pred_check
      _
    $region7: #{tpu_custom_call.1} parent=1 // pred_check_branch
      %21 = sbr.rel (0) target = $region9
    $region8: #{tpu_custom_call.1} parent=1 // pred_region
      %22 = dma.done [#allocation3], 256
    $region9: #{tpu_custom_call.1} parent=1 // pred_fallthru
      _
    %v23 = vld [vmem:[#allocation2] sm:$0xff]
    %v24 = vld [vmem:[#allocation2 + $0x8] sm:$0xff]
    %v25 = vmax.f32 %v23, 0.0
    %v26 = vmax.f32 %v24, 0.0
    %27 = vst [vmem:[#allocation5] sm:$0xff] %v25
    %28 = vst [vmem:[#allocation5 + $0x8] sm:$0xff] %v26
    // Predicated region
    $region10: #{tpu_custom_call.1} parent=1 // pred_check
      _
    $region11: #{tpu_custom_call.1} parent=1 // pred_check_branch
      %30 = sbr.rel (0) target = $region13
    $region12: #{tpu_custom_call.1} parent=1 // pred_region
      %s32 = ssub.s32 256, 256
      %33 = vsyncadd [#allocation4], %s32
      %s34 = sshll.u32 [#allocation5], 4
      %s35 = int_to_ptr.vmem [resolvable:$true] %s34
      %40 = dma.vmem_to_hbm [thread:$0]  %s35, 256, %s1, [#allocation4], 128, 128, 8
    $region13: #{tpu_custom_call.1} parent=1 // pred_fallthru
      _
    // Predicated region
    $region14: #{tpu_custom_call.1} parent=1 // pred_check
      _
    $region15: #{tpu_custom_call.1} parent=1 // pred_check_branch
      %42 = sbr.rel (0) target = $region17
    $region16: #{tpu_custom_call.1} parent=1 // pred_region
      %43 = dma.done [#allocation4], 256
    $region17: #{tpu_custom_call.1} parent=1 // pred_fallthru
      _
    %44 = vsyncpa [#allocation3], 1
    %45 = vsyncpa [#allocation4], 1

</llo_original>
